<compile_context>
chip_gen: v5e
topology: v5e:2x2
jax: 0.10.0
libtpu: 0.0.40
codegen_flags: <defaults>
</compile_context>

<pallas_src>
import jax
import jax.numpy as jnp
from jax.experimental import pallas as pl
from jax.experimental.pallas import tpu as pltpu

IN_DIM = 64        # input_size of the example module instance
HID_DIM = 128      # fc1 output features
OUT_DIM = 1        # fc2 output features
DEFAULT_TILE_N = 8192   # 2 MiB input block; fits all generations' scoped VMEM


def _round_up(x, m):
    return ((x + m - 1) // m) * m


def domain_graph_classifier_kernel(x_ref, w1_ref, b1_ref, w2_ref, b2_ref, out_ref):
    # x_ref:   (TILE_N, IN_DIM)        input rows for this batch tile (f32)
    # w1_ref:  (IN_DIM, HID_DIM)       fc1 weight, pre-transposed, bf16, VMEM-resident
    # b1_ref:  (1, HID_DIM)            fc1 bias (f32)
    # w2_ref:  (1, HID_DIM)            fc2 weight row (f32)
    # b2_ref:  (1, 1)                  fc2 bias, SMEM scalar
    # out_ref: (TILE_N//128, 128)      lane-dense sigmoid probabilities
    tile_n = x_ref.shape[0]
    g = tile_n // 128

    # fc1 on the MXU in bf16 with f32 accumulation, then bias + ReLU (VPU).
    x_bf = x_ref[...].astype(jnp.bfloat16)
    h = jnp.dot(x_bf, w1_ref[...], preferred_element_type=jnp.float32)
    h = jnp.maximum(h + b1_ref[...], 0.0)                       # (TILE_N, 128)

    # fc2 as VPU multiply + XLU transpose + sublane reduction so the logits
    # land lane-dense (128 rows per vreg row) instead of a (TILE_N, 1) column.
    prod = h * w2_ref[...]                                      # (TILE_N, 128)
    prod = prod.reshape(g, 128, HID_DIM)                        # split rows into 128-groups
    prod_t = jnp.swapaxes(prod, 1, 2)                           # (g, HID, 128): [gi,k,l]
    logits = jnp.sum(prod_t, axis=1) + b2_ref[0, 0]             # (g, 128) lane-dense

    out_ref[...] = jax.nn.sigmoid(logits).astype(out_ref.dtype)  # dense EUP + dense stores


def pack_params(params):
    """One-time parameter packing (hoisted out of the per-call wrapper)."""
    return {
        # fc1 weight pre-transposed and stored bf16 for the MXU.
        "w1": jnp.asarray(params["fc1_w"], jnp.float32).T.astype(jnp.bfloat16),  # (IN, HID)
        "b1": jnp.asarray(params["fc1_b"], jnp.float32)[None, :],                # (1, HID)
        # fc2 weight as a (1, HID) row (torch layout already (1, HID)).
        "w2": jnp.asarray(params["fc2_w"], jnp.float32).reshape(1, HID_DIM),     # (1, HID)
        "b2": jnp.asarray(params["fc2_b"], jnp.float32).reshape(1, 1),           # (1, 1) SMEM scalar
    }


def domain_graph_classifier(x, packed, *, tile_n=DEFAULT_TILE_N):
    """Fused fc1->relu->fc2->sigmoid Pallas kernel.

    x: (N, IN_DIM) float32.  Returns (N, 1) float32 probabilities.
    """
    n, in_dim = x.shape
    assert in_dim == packed["w1"].shape[0]

    # Tile selection:
    #  * single tile when the batch fits (tile = round_up(N, 128) so the
    #    lane-dense output block equals the full output array),
    #  * otherwise a multiple of 1024 rows so the (tile//128, 128) output
    #    block satisfies the (8, 128) divisibility rule.
    # No jnp.pad of x: grid = cdiv(N, tile); Pallas masks the partial tail
    # block (rows are independent, so garbage tail rows are simply sliced off).
    if n <= tile_n:
        tile = _round_up(max(n, 1), 128)
    else:
        tile = _round_up(tile_n, 1024)
    num_tiles = pl.cdiv(n, tile)          # >= 2 whenever N > tile (megacore split)
    g_tile = tile // 128
    g_total = pl.cdiv(n, 128)

    cost = pl.CostEstimate(
        flops=2 * n * in_dim * HID_DIM + 3 * n * HID_DIM,
        transcendentals=n,
        bytes_accessed=n * in_dim * 4 + g_total * 128 * 4
        + in_dim * HID_DIM * 2 + HID_DIM * 4 + HID_DIM * 4 + 4,
    )

    out2d = pl.pallas_call(
        domain_graph_classifier_kernel,
        out_shape=jax.ShapeDtypeStruct((g_total, 128), jnp.float32),
        grid=(num_tiles,),
        in_specs=[
            # batch-tiled input (auto-pipelined, partial tail masked by Pallas)
            pl.BlockSpec((tile, in_dim), lambda i: (i, 0)),
            # weights / biases: constant index -> stay resident in VMEM
            pl.BlockSpec((in_dim, HID_DIM), lambda i: (0, 0)),
            pl.BlockSpec((1, HID_DIM), lambda i: (0, 0)),
            pl.BlockSpec((1, HID_DIM), lambda i: (0, 0)),
            # fc2 bias as an SMEM scalar (avoids a padded (8,128) VMEM tile)
            pl.BlockSpec(memory_space=pltpu.MemorySpace.SMEM),
        ],
        out_specs=pl.BlockSpec((g_tile, 128), lambda i: (i, 0)),
        compiler_params=pltpu.CompilerParams(
            # batch tiles are independent -> shard across TCs on v7x
            dimension_semantics=("parallel",),
            # room for double-buffered 2 MiB input + f32 intermediates; also
            # raises v5e's 16 MiB default scoped limit.
            vmem_limit_bytes=32 * 1024 * 1024,
        ),
        cost_estimate=cost,
    )(x, packed["w1"], packed["b1"], packed["w2"], packed["b2"])

    # Lane-dense (ceil(N/128), 128) -> (N, 1); row-major flatten matches the
    # kernel's row-to-lane ordering (global row = g*128 + lane).
    return out2d.reshape(-1)[:n].reshape(n, OUT_DIM)


def init_params(key, input_size=IN_DIM):
    """torch.nn.Linear-style init: uniform(-1/sqrt(fan_in), 1/sqrt(fan_in))."""
    k1, k2, k3, k4 = jax.random.split(key, 4)
    bnd1 = 1.0 / jnp.sqrt(input_size)
    bnd2 = 1.0 / jnp.sqrt(HID_DIM)
    return {
        "fc1_w": jax.random.uniform(k1, (HID_DIM, input_size), jnp.float32, -bnd1, bnd1),
        "fc1_b": jax.random.uniform(k2, (HID_DIM,), jnp.float32, -bnd1, bnd1),
        "fc2_w": jax.random.uniform(k3, (OUT_DIM, HID_DIM), jnp.float32, -bnd2, bnd2),
        "fc2_b": jax.random.uniform(k4, (OUT_DIM,), jnp.float32, -bnd2, bnd2),
    }


def reference_forward(x, params):
    """Plain-JAX (f32) reference of the PyTorch forward."""
    h = jnp.maximum(x @ params["fc1_w"].T + params["fc1_b"], 0.0)
    return jax.nn.sigmoid(h @ params["fc2_w"].T + params["fc2_b"])


if __name__ == "__main__":
    key = jax.random.PRNGKey(0)
    k_params, k_x1, k_x2, k_x3 = jax.random.split(key, 4)

    params = init_params(k_params)
    packed = pack_params(params)   # one-time packing, hoisted out of the call

    def _check(x, tile_n=DEFAULT_TILE_N, atol=2e-2):
        out = domain_graph_classifier(x, packed, tile_n=tile_n)
        jax.block_until_ready(out)
        ref = reference_forward(x, params)
        assert out.shape == (x.shape[0], OUT_DIM), out.shape
        err = float(jnp.max(jnp.abs(out - ref)))
        assert err < atol, f"max abs err {err}"

    # Case 1: small, sublane-aligned batch (single tile).
    _check(jax.random.normal(k_x1, (16, IN_DIM), jnp.float32))

    # Case 2: ragged batch (N not a multiple of 8/128) -> masked tail, no pad.
    _check(jax.random.normal(k_x2, (13, IN_DIM), jnp.float32))

    # Case 3: multi-tile batch with a partial last tile (exercises the
    # masked-tail + lane-dense-output paths across several grid steps).
    _check(jax.random.normal(k_x3, (2500, IN_DIM), jnp.float32), tile_n=1024)

    print("KERNEL_OK")
</pallas_src>

<mosaic_0001>
module attributes {stable_mosaic.version = 11 : i64} {
  func.func @domain_graph_classifier_kernel(%arg0: i32, %arg1: memref<128x64xf32, #tpu.memory_space<vmem>>, %arg2: memref<64x128xbf16, #tpu.memory_space<vmem>>, %arg3: memref<1x128xf32, #tpu.memory_space<vmem>>, %arg4: memref<1x128xf32, #tpu.memory_space<vmem>>, %arg5: memref<1x1xf32, #tpu.memory_space<smem>>, %arg6: memref<1x128xf32, #tpu.memory_space<vmem>>) attributes {dimension_semantics = [#tpu.dimension_semantics<parallel>], iteration_bounds = array<i64: 1>, scalar_prefetch = 0 : i64, scratch_operands = 0 : i64, tpu.core_type = #tpu.core_type<tc>, window_params = [{transform_indices = @transform_0, window_bounds = array<i64: 128, 64>}, {pipeline_mode = #tpu.pipeline_mode<synchronous>, transform_indices = @transform_1, window_bounds = array<i64: 64, 128>}, {pipeline_mode = #tpu.pipeline_mode<synchronous>, transform_indices = @transform_2, window_bounds = array<i64: 1, 128>}, {pipeline_mode = #tpu.pipeline_mode<synchronous>, transform_indices = @transform_3, window_bounds = array<i64: 1, 128>}, {transform_indices = @transform_4, window_bounds = array<i64: 1, 1>}, {transform_indices = @transform_5, window_bounds = array<i64: 1, 128>}]} {
    %c0 = arith.constant 0 : index
    %c0_0 = arith.constant 0 : index
    %0 = vector.load %arg1[%c0, %c0_0] : memref<128x64xf32, #tpu.memory_space<vmem>>, vector<128x64xf32>
    %1 = arith.truncf %0 : vector<128x64xf32> to vector<128x64xbf16>
    %c0_1 = arith.constant 0 : index
    %c0_2 = arith.constant 0 : index
    %2 = vector.load %arg2[%c0_1, %c0_2] : memref<64x128xbf16, #tpu.memory_space<vmem>>, vector<64x128xbf16>
    %cst = arith.constant dense<0.000000e+00> : vector<128x128xf32>
    %3 = tpu.matmul %1, %2, %cst {dimension_numbers = #tpu.dot_dimension_numbers<[1], [0], [0], [1], [0, 0, 1, 1], [], []>} : vector<128x64xbf16>, vector<64x128xbf16>, vector<128x128xf32> -> vector<128x128xf32>
    %c0_3 = arith.constant 0 : index
    %c0_4 = arith.constant 0 : index
    %4 = vector.load %arg3[%c0_3, %c0_4] : memref<1x128xf32, #tpu.memory_space<vmem>>, vector<1x128xf32>
    %5 = vector.broadcast %4 : vector<1x128xf32> to vector<128x128xf32>
    %6 = arith.addf %3, %5 : vector<128x128xf32>
    %cst_5 = arith.constant 0.000000e+00 : f32
    %7 = vector.broadcast %cst_5 : f32 to vector<128x128xf32>
    %8 = arith.maximumf %6, %7 : vector<128x128xf32>
    %c0_6 = arith.constant 0 : index
    %c0_7 = arith.constant 0 : index
    %9 = vector.load %arg4[%c0_6, %c0_7] : memref<1x128xf32, #tpu.memory_space<vmem>>, vector<1x128xf32>
    %10 = vector.broadcast %9 : vector<1x128xf32> to vector<128x128xf32>
    %11 = arith.mulf %8, %10 : vector<128x128xf32>
    %12 = vector.shape_cast %11 : vector<128x128xf32> to vector<1x128x128xf32>
    %13 = tpu.transpose %12, [0, 2, 1] : vector<1x128x128xf32> -> vector<1x128x128xf32>
    %cst_8 = arith.constant dense<0.000000e+00> : vector<1x128xf32>
    %14 = vector.multi_reduction <add>, %13, %cst_8 [1] : vector<1x128x128xf32> to vector<1x128xf32>
    %c0_9 = arith.constant 0 : index
    %c0_10 = arith.constant 0 : index
    %15 = memref.load %arg5[%c0_9, %c0_10] : memref<1x1xf32, #tpu.memory_space<smem>>
    %16 = vector.broadcast %15 : f32 to vector<1x128xf32>
    %17 = arith.addf %14, %16 : vector<1x128xf32>
    %18 = arith.negf %17 : vector<1x128xf32>
    %19 = math.exp %18 : vector<1x128xf32>
    %cst_11 = arith.constant 1.000000e+00 : f32
    %20 = vector.broadcast %cst_11 : f32 to vector<1x128xf32>
    %21 = arith.addf %20, %19 : vector<1x128xf32>
    %22 = arith.divf %20, %21 : vector<1x128xf32>
    %c0_12 = arith.constant 0 : index
    %c0_13 = arith.constant 0 : index
    %23 = vector.load %arg6[%c0_12, %c0_13] : memref<1x128xf32, #tpu.memory_space<vmem>>, vector<1x128xf32>
    tpu.vector_store %arg6[%c0_12, %c0_13], %22 {strides = array<i32>} : memref<1x128xf32, #tpu.memory_space<vmem>>, vector<1x128xf32>,
    return
  }
  func.func @transform_0(%arg0: i32) -> (i32, i32) {
    %c0_i32 = arith.constant 0 : i32
    %c0_i32_0 = arith.constant 0 : i32
    return %arg0, %c0_i32 : i32, i32
  }
  func.func @transform_1(%arg0: i32) -> (i32, i32) {
    %c0_i32 = arith.constant 0 : i32
    %c0_i32_0 = arith.constant 0 : i32
    %c0_i32_1 = arith.constant 0 : i32
    return %c0_i32, %c0_i32_0 : i32, i32
  }
  func.func @transform_2(%arg0: i32) -> (i32, i32) {
    %c0_i32 = arith.constant 0 : i32
    %c0_i32_0 = arith.constant 0 : i32
    %c0_i32_1 = arith.constant 0 : i32
    return %c0_i32, %c0_i32_0 : i32, i32
  }
  func.func @transform_3(%arg0: i32) -> (i32, i32) {
    %c0_i32 = arith.constant 0 : i32
    %c0_i32_0 = arith.constant 0 : i32
    %c0_i32_1 = arith.constant 0 : i32
    return %c0_i32, %c0_i32_0 : i32, i32
  }
  func.func @transform_4(%arg0: i32) -> (i32, i32) {
    %c0_i32 = arith.constant 0 : i32
    %c0_i32_0 = arith.constant 0 : i32
    %c0_i32_1 = arith.constant 0 : i32
    return %c0_i32, %c0_i32_0 : i32, i32
  }
  func.func @transform_5(%arg0: i32) -> (i32, i32) {
    %c0_i32 = arith.constant 0 : i32
    %c0_i32_0 = arith.constant 0 : i32
    return %arg0, %c0_i32 : i32, i32
  }
}

</mosaic_0001>

<llo_original>
// kernel: tpu_custom_call.1
$region0: #{tpu_custom_call.1}
  #allocation0 [shape = 'u32[]', space=smem, size = 0x4, offset = 0x4, fixed_abs, tag = 'smem constant byte address 0x4 - core index']
  #allocation1 [shape = 'u32[72,128]{1,0:T(1,128)}', space=vmem, size = 0x9000, scoped, tag = 'internal scratch']
  #allocation2 [shape = 'f32[1,1]{1,0:T(1,128)S(6)}', space=smem, size = 0x200, scoped, tag = 'scoped memory for tpu_custom_call.1']
  %s0 = inlined_call_operand.hbm [shape: f32[16,64], index: 0, kind: input, shape index: {}]
  %s1 = inlined_call_operand.hbm [shape: bf16[64,128], index: 1, kind: input, shape index: {}]
  %s2 = inlined_call_operand.vmem [shape: f32[1,128], index: 2, kind: input, shape index: {}]
  %s3 = inlined_call_operand.vmem [shape: f32[1,128], index: 3, kind: input, shape index: {}]
  %s4 = inlined_call_operand.<no memory space> [shape: f32[1,1], index: 4, kind: input, shape index: {}]
  %s5 = inlined_call_operand.hbm [shape: f32[1,128], index: 5, kind: output, shape index: {}]
  %s6 = sld [smem:[#allocation0]]
  $region38: #{tpu_custom_call.1} parent=0
    _
  %s8 = ssub.s32 1, %s6
  %s9 = scalar_select 0, %s8, %s6
  %10 = sst [smem:[#allocation2]] %s4
  $region1: #{tpu_custom_call.1} parent=0
    #allocation3 [shape = 'u8[65536]{0}', space=vmem, size = 0x10000, scoped, tag = 'input window, operand 0, single buffered']
    #allocation4 [shape = 's32[1]{0}', space=sflag, size = 0x4, scoped, tag = 'scoped memory for tpu_custom_call.1']
    #allocation5 [shape = 's32[1]{0}', space=sflag, size = 0x4, scoped, tag = 'scoped memory for tpu_custom_call.1']
    #allocation6 [shape = 'u8[16384]{0}', space=vmem, size = 0x4000, scoped, tag = 'input window, operand 1, single buffered']
    #allocation7 [shape = 's32[1]{0}', space=sflag, size = 0x4, scoped, tag = 'scoped memory for tpu_custom_call.1']
    #allocation8 [shape = 'u8[512]{0}', space=vmem, size = 0x400, scoped, tag = 'output window, operand 0, single buffered']
    %11 = vsyncpa [#allocation4], 0
    %12 = vsyncpa [#allocation7], 0
    %13 = vsyncpa [#allocation5], 0
    // Predicated region
    $region2: #{tpu_custom_call.1} parent=1 // pred_check
      _
    $region3: #{tpu_custom_call.1} parent=1 // pred_check_branch
      %15 = sbr.rel (0) target = $region5
    $region4: #{tpu_custom_call.1} parent=1 // pred_region
      %17 = vsyncadd [#allocation4], 1792
      %s18 = sshll.u32 %s0, 4
      %s19 = int_to_ptr.hbm [resolvable:$true] %s18
      %s20 = sshll.u32 [#allocation3], 4
      %s21 = int_to_ptr.vmem [resolvable:$true] %s20
      %26 = dma.hbm_to_vmem [thread:$0]  %s19, 256, %s21, [#allocation4], 128, 128, 8
    $region5: #{tpu_custom_call.1} parent=1 // pred_fallthru
      _
    // Predicated region
    $region6: #{tpu_custom_call.1} parent=1 // pred_check
      _
    $region7: #{tpu_custom_call.1} parent=1 // pred_check_branch
      %28 = sbr.rel (0) target = $region9
    $region8: #{tpu_custom_call.1} parent=1 // pred_region
      %30 = vsyncadd [#allocation7], 0
      %s31 = sshll.u32 %s1, 4
      %s32 = int_to_ptr.hbm [resolvable:$true] %s31
      %s33 = sshll.u32 [#allocation6], 4
      %s34 = int_to_ptr.vmem [resolvable:$true] %s33
      %39 = dma.hbm_to_vmem [thread:$0]  %s32, 512, %s34, [#allocation7], 64, 64, 4
    $region9: #{tpu_custom_call.1} parent=1 // pred_fallthru
      _
    // Predicated region
    $region10: #{tpu_custom_call.1} parent=1 // pred_check
      _
    $region11: #{tpu_custom_call.1} parent=1 // pred_check_branch
      %41 = sbr.rel (0) target = $region13
    $region12: #{tpu_custom_call.1} parent=1 // pred_region
      _
    $region13: #{tpu_custom_call.1} parent=1 // pred_fallthru
      _
    // Predicated region
    $region14: #{tpu_custom_call.1} parent=1 // pred_check
      _
    $region15: #{tpu_custom_call.1} parent=1 // pred_check_branch
      %43 = sbr.rel (0) target = $region17
    $region16: #{tpu_custom_call.1} parent=1 // pred_region
      _
    $region17: #{tpu_custom_call.1} parent=1 // pred_fallthru
      _
    // Predicated region
    $region18: #{tpu_custom_call.1} parent=1 // pred_check
      _
    $region19: #{tpu_custom_call.1} parent=1 // pred_check_branch
      %45 = sbr.rel (0) target = $region21
    $region20: #{tpu_custom_call.1} parent=1 // pred_region
      _
    $region21: #{tpu_custom_call.1} parent=1 // pred_fallthru
      _
    // Predicated region
    $region22: #{tpu_custom_call.1} parent=1 // pred_check
      _
    $region23: #{tpu_custom_call.1} parent=1 // pred_check_branch
      %47 = sbr.rel (0) target = $region25
    $region24: #{tpu_custom_call.1} parent=1 // pred_region
      %49 = dma.done [#allocation4], 2048
    $region25: #{tpu_custom_call.1} parent=1 // pred_fallthru
      _
    // Predicated region
    $region26: #{tpu_custom_call.1} parent=1 // pred_check
      _
    $region27: #{tpu_custom_call.1} parent=1 // pred_check_branch
      %51 = sbr.rel (0) target = $region29
    $region28: #{tpu_custom_call.1} parent=1 // pred_region
      %53 = dma.done [#allocation7], 512
    $region29: #{tpu_custom_call.1} parent=1 // pred_fallthru
      _
    %v55 = vld [vmem:[#allocation3] sm:$0xff]
    %v56 = vld [vmem:[#allocation3 + $0x8] sm:$0xff]
    %v57 = vld [vmem:[#allocation3 + $0x10] sm:$0xff]
    %v58 = vld [vmem:[#allocation3 + $0x18] sm:$0xff]
    %v59 = vld [vmem:[#allocation3 + $0x20] sm:$0xff]
    %v60 = vld [vmem:[#allocation3 + $0x28] sm:$0xff]
    %v61 = vld [vmem:[#allocation3 + $0x30] sm:$0xff]
    %v62 = vld [vmem:[#allocation3 + $0x38] sm:$0xff]
    %v63 = vld [vmem:[#allocation3 + $0x40] sm:$0xff]
    %v64 = vld [vmem:[#allocation3 + $0x48] sm:$0xff]
    %v65 = vld [vmem:[#allocation3 + $0x50] sm:$0xff]
    %v66 = vld [vmem:[#allocation3 + $0x58] sm:$0xff]
    %v67 = vld [vmem:[#allocation3 + $0x60] sm:$0xff]
    %v68 = vld [vmem:[#allocation3 + $0x68] sm:$0xff]
    %v69 = vld [vmem:[#allocation3 + $0x70] sm:$0xff]
    %v70 = vld [vmem:[#allocation3 + $0x78] sm:$0xff]
    %v71 = vpack.c.bf16 %v56, %v55
    %v72 = vpack.c.bf16 %v58, %v57
    %v73 = vpack.c.bf16 %v60, %v59
    %v74 = vpack.c.bf16 %v62, %v61
    %v75 = vpack.c.bf16 %v64, %v63
    %v76 = vpack.c.bf16 %v66, %v65
    %v77 = vpack.c.bf16 %v68, %v67
    %v78 = vpack.c.bf16 %v70, %v69
    %v79 = vld [vmem:[#allocation6] sm:$0xf]
    %v80 = vld [vmem:[#allocation6 + $0x4] sm:$0xf]
    %v81 = vld [vmem:[#allocation6 + $0x8] sm:$0xf]
    %v82 = vld [vmem:[#allocation6 + $0xc] sm:$0xf]
    %v83 = vld [vmem:[#allocation6 + $0x10] sm:$0xf]
    %v84 = vld [vmem:[#allocation6 + $0x14] sm:$0xf]
    %v85 = vld [vmem:[#allocation6 + $0x18] sm:$0xf]
    %v86 = vld [vmem:[#allocation6 + $0x1c] sm:$0xf]
    %v87 = vld [vmem:[%s2] sm:$0x1]
    %v89 = vperm.slane %v87, 0
    %v99 = vunpack.c.l.b16 %v79
    %v100 = vunpack.c.l.b16 %v80
    %v101 = vunpack.c.l.b16 %v81
    %v102 = vunpack.c.l.b16 %v82
    %v103 = vunpack.c.l.b16 %v83
    %v104 = vunpack.c.l.b16 %v84
    %v105 = vunpack.c.l.b16 %v85
    %v106 = vunpack.c.l.b16 %v86
    %v107 = vpack.c.b16 %v100, %v99
    %v108 = vpack.c.b16 %v102, %v101
    %v109 = vpack.c.b16 %v104, %v103
    %v110 = vpack.c.b16 %v106, %v105
    %vm115 = vcmask 523264
    %v117 = vsel %vm115, %v71, 0
    %v120 = vsel %vm115, %v72, 0
    %v123 = vsel %vm115, %v73, 0
    %v126 = vsel %vm115, %v74, 0
    %v129 = vsel %vm115, %v75, 0
    %v132 = vsel %vm115, %v76, 0
    %v135 = vsel %vm115, %v77, 0
    %v138 = vsel %vm115, %v78, 0
    %140 = vmatpush.bf16.msra.mxu0 0
    %141 = vmatpush.bf16.msra.mxu0 0
    %142 = vmatpush.bf16.msra.mxu0 0
    %143 = vmatpush.bf16.msra.mxu0 0
    %144 = vmatpush.bf16.msra.mxu0 %v110
    %145 = vmatpush.bf16.msra.mxu0 %v109
    %146 = vmatpush.bf16.msra.mxu0 %v108
    %147 = vmatpush.bf16.msra.mxu0 %v107
    %148 = vmatmul.bf16.gmra.mxu0 %v117
    %v149 = vpop.f32.mrf.mxu0
    %v150 = vadd.f32 %v89, %v149
    %v151 = vpop.f32.mrf.mxu0
    %v152 = vadd.f32 %v89, %v151
    %153 = vmatmul.bf16.gmra.mxu0 %v120
    %v154 = vpop.f32.mrf.mxu0
    %v155 = vadd.f32 %v89, %v154
    %v156 = vpop.f32.mrf.mxu0
    %v157 = vadd.f32 %v89, %v156
    %158 = vmatmul.bf16.gmra.mxu0 %v123
    %v159 = vpop.f32.mrf.mxu0
    %v160 = vadd.f32 %v89, %v159
    %v161 = vpop.f32.mrf.mxu0
    %v162 = vadd.f32 %v89, %v161
    %163 = vmatmul.bf16.gmra.mxu0 %v126
    %v164 = vpop.f32.mrf.mxu0
    %v165 = vadd.f32 %v89, %v164
    %v166 = vpop.f32.mrf.mxu0
    %v167 = vadd.f32 %v89, %v166
    %168 = vmatmul.bf16.gmra.mxu0 %v129
    %v169 = vpop.f32.mrf.mxu0
    %v170 = vadd.f32 %v89, %v169
    %v171 = vpop.f32.mrf.mxu0
    %v172 = vadd.f32 %v89, %v171
    %173 = vmatmul.bf16.gmra.mxu0 %v132
    %v174 = vpop.f32.mrf.mxu0
    %v175 = vadd.f32 %v89, %v174
    %v176 = vpop.f32.mrf.mxu0
    %v177 = vadd.f32 %v89, %v176
    %178 = vmatmul.bf16.gmra.mxu0 %v135
    %v179 = vpop.f32.mrf.mxu0
    %v180 = vadd.f32 %v89, %v179
    %v181 = vpop.f32.mrf.mxu0
    %v182 = vadd.f32 %v89, %v181
    %183 = vmatmul.bf16.gmra.mxu0 %v138
    %v184 = vpop.f32.mrf.mxu0
    %v185 = vadd.f32 %v89, %v184
    %v186 = vpop.f32.mrf.mxu0
    %v187 = vadd.f32 %v89, %v186
    %188 = vdwg.mxu0
    %v189 = vmax.f32 %v150, 0.0
    %v190 = vmax.f32 %v152, 0.0
    %v191 = vmax.f32 %v155, 0.0
    %v192 = vmax.f32 %v157, 0.0
    %v193 = vmax.f32 %v160, 0.0
    %v194 = vmax.f32 %v162, 0.0
    %v195 = vmax.f32 %v165, 0.0
    %v196 = vmax.f32 %v167, 0.0
    %v197 = vmax.f32 %v170, 0.0
    %v198 = vmax.f32 %v172, 0.0
    %v199 = vmax.f32 %v175, 0.0
    %v200 = vmax.f32 %v177, 0.0
    %v201 = vmax.f32 %v180, 0.0
    %v202 = vmax.f32 %v182, 0.0
    %v203 = vmax.f32 %v185, 0.0
    %v204 = vmax.f32 %v187, 0.0
    %v205 = vld [vmem:[%s3] sm:$0x1]
    %v207 = vperm.slane %v205, 0
    %v209 = vmul.f32 %v189, %v207
    %v210 = vmul.f32 %v190, %v207
    %v211 = vmul.f32 %v191, %v207
    %v212 = vmul.f32 %v192, %v207
    %v213 = vmul.f32 %v193, %v207
    %v214 = vmul.f32 %v194, %v207
    %v215 = vmul.f32 %v195, %v207
    %v216 = vmul.f32 %v196, %v207
    %v217 = vmul.f32 %v197, %v207
    %v218 = vmul.f32 %v198, %v207
    %v219 = vmul.f32 %v199, %v207
    %v220 = vmul.f32 %v200, %v207
    %v221 = vmul.f32 %v201, %v207
    %v222 = vmul.f32 %v202, %v207
    %v223 = vmul.f32 %v203, %v207
    %v224 = vmul.f32 %v204, %v207
    %225 = vxpose.xlu0.b32.start [1/16] %v209, 128
    %226 = vxpose.xlu0.b32.cont [2/16] %v210, 128
    %227 = vxpose.xlu0.b32.cont [3/16] %v211, 128
    %228 = vxpose.xlu0.b32.cont [4/16] %v212, 128
    %229 = vxpose.xlu0.b32.cont [5/16] %v213, 128
    %230 = vxpose.xlu0.b32.cont [6/16] %v214, 128
    %231 = vxpose.xlu0.b32.cont [7/16] %v215, 128
    %232 = vxpose.xlu0.b32.cont [8/16] %v216, 128
    %233 = vxpose.xlu0.b32.cont [9/16] %v217, 128
    %234 = vxpose.xlu0.b32.cont [10/16] %v218, 128
    %235 = vxpose.xlu0.b32.cont [11/16] %v219, 128
    %236 = vxpose.xlu0.b32.cont [12/16] %v220, 128
    %237 = vxpose.xlu0.b32.cont [13/16] %v221, 128
    %238 = vxpose.xlu0.b32.cont [14/16] %v222, 128
    %239 = vxpose.xlu0.b32.cont [15/16] %v223, 128
    %240 = vxpose.xlu0.b32.end [16/16] %v224, 128
    %v241 = vpop.trf.xlu0
    %v242 = vpop.trf.xlu0
    %v243 = vpop.trf.xlu0
    %v244 = vpop.trf.xlu0
    %v245 = vpop.trf.xlu0
    %v246 = vpop.trf.xlu0
    %v247 = vpop.trf.xlu0
    %v248 = vpop.trf.xlu0
    %v249 = vpop.trf.xlu0
    %v250 = vpop.trf.xlu0
    %v251 = vpop.trf.xlu0
    %v252 = vpop.trf.xlu0
    %v253 = vpop.trf.xlu0
    %v254 = vpop.trf.xlu0
    %v255 = vpop.trf.xlu0
    %v256 = vpop.trf.xlu0
    %v257 = vadd.f32 %v241, %v242
    %v258 = vadd.f32 %v257, %v243
    %v259 = vadd.f32 %v258, %v244
    %v260 = vadd.f32 %v259, %v245
    %v261 = vadd.f32 %v260, %v246
    %v262 = vadd.f32 %v261, %v247
    %v263 = vadd.f32 %v262, %v248
    %v264 = vadd.f32 %v263, %v249
    %v265 = vadd.f32 %v264, %v250
    %v266 = vadd.f32 %v265, %v251
    %v267 = vadd.f32 %v266, %v252
    %v268 = vadd.f32 %v267, %v253
    %v269 = vadd.f32 %v268, %v254
    %v270 = vadd.f32 %v269, %v255
    %v271 = vadd.f32 %v270, %v256
    %v272 = vrot.slane %v271, 4
    %v273 = vadd.f32 %v271, %v272
    %v274 = vrot.slane %v273, 2
    %v275 = vadd.f32 %v273, %v274
    %v276 = vrot.slane %v275, 1
    %v277 = vadd.f32 %v275, %v276
    %s278 = sld [smem:[#allocation2]]
    %v279 = vstv %s278
    %v280 = vadd.f32 %v277, %v279
    %v281 = vxor.u32 %v280, 2147483648
    %v282 = vmul.f32 %v281, 1.442695
    %v283 = vpow.pop %v282
    %v284 = vadd.f32 %v283, 1.0
    %v285 = vrcp.pop %v284
    %v286 = vmul.f32 %v284, %v285
    %v287 = vsub.f32 1.0, %v286
    %v288 = vmul.f32 %v285, %v287
    %v289 = vadd.f32 %v285, %v288
    %vm290 = vweird.f32 %v284
    %vm291 = vweird.f32 %v285
    %vm292 = vmor %vm290, %vm291
    %v293 = vsel %vm292, %v285, %v289
    %v294 = vand.u32 2147483647, %v284
    %vm295 = vcmp.eq.f32.partialorder %v294, 8.507059e+37
    %v296 = vand.u32 %v284, 2147483648
    %v297 = vor.u32 1.1754944e-38, %v296
    %v298 = vsel %vm295, %v297, %v293
    %v299 = vmul.f32 1.0, %v298
    %300 = vst [vmem:[#allocation8] sm:$0x1] %v299
    // Predicated region
    $region30: #{tpu_custom_call.1} parent=1 // pred_check
      _
    $region31: #{tpu_custom_call.1} parent=1 // pred_check_branch
      %302 = sbr.rel (0) target = $region33
    $region32: #{tpu_custom_call.1} parent=1 // pred_region
      %304 = vsyncadd [#allocation5], 0
      %s306 = sshll.u32 [#allocation8], 4
      %s307 = int_to_ptr.vmem [resolvable:$true] %s306
      %s308 = sshll.u32 %s5, 4
      %s309 = int_to_ptr.hbm [resolvable:$true] %s308
      %311 = dma.vmem_to_hbm [thread:$0]  %s307, 16, %s309, [#allocation5]
    $region33: #{tpu_custom_call.1} parent=1 // pred_fallthru
      _
    // Predicated region
    $region34: #{tpu_custom_call.1} parent=1 // pred_check
      _
    $region35: #{tpu_custom_call.1} parent=1 // pred_check_branch
      %313 = sbr.rel (0) target = $region37
    $region36: #{tpu_custom_call.1} parent=1 // pred_region
      %315 = dma.done [#allocation5], 16
    $region37: #{tpu_custom_call.1} parent=1 // pred_fallthru
      _
    %316 = vsyncpa [#allocation4], 1
    %317 = vsyncpa [#allocation7], 1
    %318 = vsyncpa [#allocation5], 1

</llo_original>
